<compile_context>
chip_gen: v7x
topology: tpu7x:2x2x1
jax: 0.10.0
libtpu: 0.0.40
codegen_flags: <defaults>
</compile_context>

<pallas_src>
import jax
import jax.numpy as jnp
from jax.experimental import pallas as pl
from jax.experimental.pallas import tpu as pltpu


def net_kernel(x_ref, p_ref, ws_ref, out_ref):
    """x_ref: (28, 28) VMEM input plane.
    p_ref: (40,) SMEM packed scalars [w1(25) | b1 | w2(9) | b2 | bfc(4)].
    ws_ref: (4, 17, 17) VMEM dilated fc weight planes.
    out_ref: (1, 128) VMEM lane-dense output (softmax at lanes 0..3)."""
    f32 = jnp.float32

    # Hoist the input load out of the tap loops (28x28 f32 is ~4 vregs).
    xv = x_ref[...]

    # ---- conv1: (28,28) --5x5 valid--> (24,24), +bias, ReLU (VPU only) -----
    # Lane (column) shifts hoisted: 5 column-shifted copies, the inner loop
    # only does the sublane (row) shift.
    xcols = [xv[:, kj:kj + 24] for kj in range(5)]            # each (28, 24)
    acc1 = jnp.zeros((24, 24), f32)
    for ki in range(5):
        for kj in range(5):
            acc1 = acc1 + xcols[kj][ki:ki + 24, :] * p_ref[ki * 5 + kj]
    h1 = jnp.maximum(acc1 + p_ref[25], 0.0)

    # ---- maxpool1, strided lattice form -------------------------------------
    # P[u, v] = max of the 2x2 block at (u, v); the valid pooled value
    # p1[i, j] sits at P[2i, 2j]; other entries are finite garbage that is
    # never selected by the later valid-lattice reads.
    m1 = jnp.maximum(h1[:23, :], h1[1:, :])                   # (23, 24)
    P = jnp.maximum(m1[:, :23], m1[:, 1:])                    # (23, 23)

    # ---- conv2 on the dilated lattice: taps at stride 2 ---------------------
    # A[u, v] = sum_{ki,kj} P[u+2ki, v+2kj] * w2[ki, kj]; at even (u, v):
    # A[2i, 2j] = conv2(p1)[i, j] for i, j in 0..9.  Column shifts hoisted.
    pcols = [P[:, 2 * kj:2 * kj + 19] for kj in range(3)]     # each (23, 19)
    acc2 = jnp.zeros((19, 19), f32)
    for ki in range(3):
        for kj in range(3):
            acc2 = acc2 + pcols[kj][2 * ki:2 * ki + 19, :] * p_ref[26 + ki * 3 + kj]
    h2 = jnp.maximum(acc2 + p_ref[35], 0.0)                   # (19, 19)

    # ---- maxpool2, dilation 2 on the lattice: p2[i, j] lands at Q[4i, 4j] ---
    m2 = jnp.maximum(h2[:17, :], h2[2:, :])                   # (17, 19)
    Q = jnp.maximum(m2[:, :17], m2[:, 2:])                    # (17, 17)

    # ---- fc: fc[c] = sum(Q * Ws[c]) + bfc[c]  (Ws zero off the 4-lattice) ---
    # VPU multiply + XLU full reduce per channel; the 4 logits are scattered
    # onto lanes 0..3 of a lane-dense (1, 128) row.  No MXU, no in-kernel
    # flatten / gather.
    lane = jax.lax.broadcasted_iota(jnp.int32, (1, 128), 1)
    fc = jnp.zeros((1, 128), f32)
    for c in range(4):
        sc = jnp.sum(Q * ws_ref[c]) + p_ref[36 + c]
        fc = fc + sc * (lane == c).astype(f32)
    fc = jnp.maximum(fc, 0.0)                                 # ReLU; lanes >= 4 stay 0

    # ---- softmax over the 4 logits (torch Softmax(dim=0) on the flat vec) ---
    # Lanes >= 4 are exactly 0 and the valid logits are >= 0 after ReLU, so the
    # unmasked max equals the max over the valid lanes.
    m = jnp.max(fc)
    e = jnp.where(lane < 4, jnp.exp(fc - m), 0.0)
    out_ref[...] = e / jnp.sum(e)

    # TODO(synk): the PyTorch forward's print() calls are host-side I/O and are omitted.


def pack_net_params(w1, b1, w2, b2, Wfc, bfc):
    """Weights-only packing; call ONCE and reuse (review: hoist per-call prep).

    Returns:
      params: (40,) f32 = [w1(25) | b1(1) | w2(9) | b2(1) | bfc(4)]  -> SMEM
      Ws:     (4, 17, 17) f32 dilated fc planes: Ws[c, 4i, 4j] = Wfc[c, 5i+j]
              (matches torch's row-major .view(-1) of the (5, 5) feature map),
              zeros elsewhere                                         -> VMEM
    """
    params = jnp.concatenate([
        jnp.asarray(w1, jnp.float32).reshape(-1),
        jnp.asarray(b1, jnp.float32).reshape(-1),
        jnp.asarray(w2, jnp.float32).reshape(-1),
        jnp.asarray(b2, jnp.float32).reshape(-1),
        jnp.asarray(bfc, jnp.float32).reshape(-1),
    ])                                                        # (40,)
    Ws = jnp.zeros((4, 17, 17), jnp.float32)
    Ws = Ws.at[:, ::4, ::4].set(jnp.asarray(Wfc, jnp.float32).reshape(4, 5, 5))
    return params, Ws


@jax.jit
def net_forward(x_nchw, params, ws):
    """x_nchw: (1, 1, 28, 28) float32.  params/ws from pack_net_params.
    Returns the softmax output, shape (4,)."""
    x2d = x_nchw.reshape(28, 28).astype(jnp.float32)
    out = pl.pallas_call(
        net_kernel,
        out_shape=jax.ShapeDtypeStruct((1, 128), jnp.float32),   # lane-dense
        in_specs=[
            pl.BlockSpec(memory_space=pltpu.MemorySpace.VMEM),   # x (28, 28)
            pl.BlockSpec(memory_space=pltpu.MemorySpace.SMEM),   # scalars (40,)
            pl.BlockSpec(memory_space=pltpu.MemorySpace.VMEM),   # Ws (4, 17, 17)
        ],
        out_specs=pl.BlockSpec(memory_space=pltpu.MemorySpace.VMEM),
    )(x2d, params, ws)
    return out[0, :4]


def reference_forward(x, w1, b1, w2, b2, Wfc, bfc):
    """Pure-JAX reference matching the PyTorch forward (full f32 precision)."""
    def conv(h, w, b):
        y = jax.lax.conv_general_dilated(
            h, w, window_strides=(1, 1), padding="VALID",
            dimension_numbers=("NCHW", "OIHW", "NCHW"),
            precision=jax.lax.Precision.HIGHEST)
        return jax.nn.relu(y + b.reshape(1, -1, 1, 1))

    def pool(h):
        return jax.lax.reduce_window(h, -jnp.inf, jax.lax.max,
                                     (1, 1, 2, 2), (1, 1, 2, 2), "VALID")

    h = pool(conv(x, w1, b1))
    h = pool(conv(h, w2, b2))
    v = h.reshape(-1)
    f = jax.nn.relu(jnp.dot(Wfc, v, precision=jax.lax.Precision.HIGHEST) + bfc)
    return jax.nn.softmax(f, axis=0)


if __name__ == "__main__":
    key = jax.random.PRNGKey(0)
    # Input implied by the module: NCHW, 1 channel, 28x28 (flatten -> 25 after convs/pools).
    x = jax.random.normal(key, (1, 1, 28, 28), dtype=jnp.float32)

    # ---- module-specified deterministic parameters (fill_(1) / fill_(0)) ----
    w1 = jnp.ones((1, 1, 5, 5), jnp.float32)
    b1 = jnp.zeros((1,), jnp.float32)
    w2 = jnp.ones((1, 1, 3, 3), jnp.float32)
    b2 = jnp.zeros((1,), jnp.float32)
    Wfc = jnp.ones((4, 25), jnp.float32)
    bfc = jnp.zeros((4,), jnp.float32)

    params, ws = pack_net_params(w1, b1, w2, b2, Wfc, bfc)     # hoisted, once
    out = jax.block_until_ready(net_forward(x, params, ws))
    ref = reference_forward(x, w1, b1, w2, b2, Wfc, bfc)
    assert out.shape == (4,)
    assert bool(jnp.all(jnp.isfinite(out)))
    assert bool(jnp.allclose(out, ref, atol=1e-5, rtol=1e-5))

    # ---- extra check with distinct random parameters (catches channel /
    #      lattice-packing bugs that the all-equal spec weights cannot) -------
    ks = jax.random.split(jax.random.PRNGKey(1), 6)
    w1r = 0.2 * jax.random.normal(ks[0], (1, 1, 5, 5), jnp.float32)
    b1r = 0.1 * jax.random.normal(ks[1], (1,), jnp.float32)
    w2r = 0.2 * jax.random.normal(ks[2], (1, 1, 3, 3), jnp.float32)
    b2r = 0.1 * jax.random.normal(ks[3], (1,), jnp.float32)
    Wfcr = 0.2 * jax.random.normal(ks[4], (4, 25), jnp.float32)
    bfcr = 0.1 * jax.random.normal(ks[5], (4,), jnp.float32)
    params_r, ws_r = pack_net_params(w1r, b1r, w2r, b2r, Wfcr, bfcr)
    out_r = jax.block_until_ready(net_forward(x, params_r, ws_r))
    ref_r = reference_forward(x, w1r, b1r, w2r, b2r, Wfcr, bfcr)
    assert bool(jnp.allclose(out_r, ref_r, atol=1e-4, rtol=1e-3))

    print("KERNEL_OK")
</pallas_src>

<mosaic_0001>
module attributes {stable_mosaic.version = 11 : i64} {
  func.func @net_kernel(%arg0: memref<28x28xf32, #tpu.memory_space<vmem>>, %arg1: memref<40xf32, #tpu.memory_space<smem>>, %arg2: memref<4x17x17xf32, #tpu.memory_space<vmem>>, %arg3: memref<1x128xf32, #tpu.memory_space<vmem>>) attributes {dimension_semantics = [], scalar_prefetch = 0 : i64, scratch_operands = 0 : i64, tpu.core_type = #tpu.core_type<tc>} {
    %c0 = arith.constant 0 : index
    %c0_0 = arith.constant 0 : index
    %0 = vector.load %arg0[%c0, %c0_0] : memref<28x28xf32, #tpu.memory_space<vmem>>, vector<28x28xf32>
    %1 = vector.extract_strided_slice %0 {offsets = [0, 0], sizes = [28, 24], strides = [1, 1]} : vector<28x28xf32> to vector<28x24xf32>
    %2 = vector.extract_strided_slice %0 {offsets = [0, 1], sizes = [28, 24], strides = [1, 1]} : vector<28x28xf32> to vector<28x24xf32>
    %3 = vector.extract_strided_slice %0 {offsets = [0, 2], sizes = [28, 24], strides = [1, 1]} : vector<28x28xf32> to vector<28x24xf32>
    %4 = vector.extract_strided_slice %0 {offsets = [0, 3], sizes = [28, 24], strides = [1, 1]} : vector<28x28xf32> to vector<28x24xf32>
    %5 = vector.extract_strided_slice %0 {offsets = [0, 4], sizes = [28, 24], strides = [1, 1]} : vector<28x28xf32> to vector<28x24xf32>
    %cst = arith.constant 0.000000e+00 : f32
    %6 = vector.broadcast %cst : f32 to vector<24x24xf32>
    %7 = vector.extract_strided_slice %1 {offsets = [0, 0], sizes = [24, 24], strides = [1, 1]} : vector<28x24xf32> to vector<24x24xf32>
    %c0_1 = arith.constant 0 : index
    %8 = memref.load %arg1[%c0_1] : memref<40xf32, #tpu.memory_space<smem>>
    %9 = vector.broadcast %8 : f32 to vector<24x24xf32>
    %10 = arith.mulf %7, %9 : vector<24x24xf32>
    %11 = arith.addf %6, %10 : vector<24x24xf32>
    %12 = vector.extract_strided_slice %2 {offsets = [0, 0], sizes = [24, 24], strides = [1, 1]} : vector<28x24xf32> to vector<24x24xf32>
    %c1 = arith.constant 1 : index
    %13 = memref.load %arg1[%c1] : memref<40xf32, #tpu.memory_space<smem>>
    %14 = vector.broadcast %13 : f32 to vector<24x24xf32>
    %15 = arith.mulf %12, %14 : vector<24x24xf32>
    %16 = arith.addf %11, %15 : vector<24x24xf32>
    %17 = vector.extract_strided_slice %3 {offsets = [0, 0], sizes = [24, 24], strides = [1, 1]} : vector<28x24xf32> to vector<24x24xf32>
    %c2 = arith.constant 2 : index
    %18 = memref.load %arg1[%c2] : memref<40xf32, #tpu.memory_space<smem>>
    %19 = vector.broadcast %18 : f32 to vector<24x24xf32>
    %20 = arith.mulf %17, %19 : vector<24x24xf32>
    %21 = arith.addf %16, %20 : vector<24x24xf32>
    %22 = vector.extract_strided_slice %4 {offsets = [0, 0], sizes = [24, 24], strides = [1, 1]} : vector<28x24xf32> to vector<24x24xf32>
    %c3 = arith.constant 3 : index
    %23 = memref.load %arg1[%c3] : memref<40xf32, #tpu.memory_space<smem>>
    %24 = vector.broadcast %23 : f32 to vector<24x24xf32>
    %25 = arith.mulf %22, %24 : vector<24x24xf32>
    %26 = arith.addf %21, %25 : vector<24x24xf32>
    %27 = vector.extract_strided_slice %5 {offsets = [0, 0], sizes = [24, 24], strides = [1, 1]} : vector<28x24xf32> to vector<24x24xf32>
    %c4 = arith.constant 4 : index
    %28 = memref.load %arg1[%c4] : memref<40xf32, #tpu.memory_space<smem>>
    %29 = vector.broadcast %28 : f32 to vector<24x24xf32>
    %30 = arith.mulf %27, %29 : vector<24x24xf32>
    %31 = arith.addf %26, %30 : vector<24x24xf32>
    %32 = vector.extract_strided_slice %1 {offsets = [1, 0], sizes = [24, 24], strides = [1, 1]} : vector<28x24xf32> to vector<24x24xf32>
    %c5 = arith.constant 5 : index
    %33 = memref.load %arg1[%c5] : memref<40xf32, #tpu.memory_space<smem>>
    %34 = vector.broadcast %33 : f32 to vector<24x24xf32>
    %35 = arith.mulf %32, %34 : vector<24x24xf32>
    %36 = arith.addf %31, %35 : vector<24x24xf32>
    %37 = vector.extract_strided_slice %2 {offsets = [1, 0], sizes = [24, 24], strides = [1, 1]} : vector<28x24xf32> to vector<24x24xf32>
    %c6 = arith.constant 6 : index
    %38 = memref.load %arg1[%c6] : memref<40xf32, #tpu.memory_space<smem>>
    %39 = vector.broadcast %38 : f32 to vector<24x24xf32>
    %40 = arith.mulf %37, %39 : vector<24x24xf32>
    %41 = arith.addf %36, %40 : vector<24x24xf32>
    %42 = vector.extract_strided_slice %3 {offsets = [1, 0], sizes = [24, 24], strides = [1, 1]} : vector<28x24xf32> to vector<24x24xf32>
    %c7 = arith.constant 7 : index
    %43 = memref.load %arg1[%c7] : memref<40xf32, #tpu.memory_space<smem>>
    %44 = vector.broadcast %43 : f32 to vector<24x24xf32>
    %45 = arith.mulf %42, %44 : vector<24x24xf32>
    %46 = arith.addf %41, %45 : vector<24x24xf32>
    %47 = vector.extract_strided_slice %4 {offsets = [1, 0], sizes = [24, 24], strides = [1, 1]} : vector<28x24xf32> to vector<24x24xf32>
    %c8 = arith.constant 8 : index
    %48 = memref.load %arg1[%c8] : memref<40xf32, #tpu.memory_space<smem>>
    %49 = vector.broadcast %48 : f32 to vector<24x24xf32>
    %50 = arith.mulf %47, %49 : vector<24x24xf32>
    %51 = arith.addf %46, %50 : vector<24x24xf32>
    %52 = vector.extract_strided_slice %5 {offsets = [1, 0], sizes = [24, 24], strides = [1, 1]} : vector<28x24xf32> to vector<24x24xf32>
    %c9 = arith.constant 9 : index
    %53 = memref.load %arg1[%c9] : memref<40xf32, #tpu.memory_space<smem>>
    %54 = vector.broadcast %53 : f32 to vector<24x24xf32>
    %55 = arith.mulf %52, %54 : vector<24x24xf32>
    %56 = arith.addf %51, %55 : vector<24x24xf32>
    %57 = vector.extract_strided_slice %1 {offsets = [2, 0], sizes = [24, 24], strides = [1, 1]} : vector<28x24xf32> to vector<24x24xf32>
    %c10 = arith.constant 10 : index
    %58 = memref.load %arg1[%c10] : memref<40xf32, #tpu.memory_space<smem>>
    %59 = vector.broadcast %58 : f32 to vector<24x24xf32>
    %60 = arith.mulf %57, %59 : vector<24x24xf32>
    %61 = arith.addf %56, %60 : vector<24x24xf32>
    %62 = vector.extract_strided_slice %2 {offsets = [2, 0], sizes = [24, 24], strides = [1, 1]} : vector<28x24xf32> to vector<24x24xf32>
    %c11 = arith.constant 11 : index
    %63 = memref.load %arg1[%c11] : memref<40xf32, #tpu.memory_space<smem>>
    %64 = vector.broadcast %63 : f32 to vector<24x24xf32>
    %65 = arith.mulf %62, %64 : vector<24x24xf32>
    %66 = arith.addf %61, %65 : vector<24x24xf32>
    %67 = vector.extract_strided_slice %3 {offsets = [2, 0], sizes = [24, 24], strides = [1, 1]} : vector<28x24xf32> to vector<24x24xf32>
    %c12 = arith.constant 12 : index
    %68 = memref.load %arg1[%c12] : memref<40xf32, #tpu.memory_space<smem>>
    %69 = vector.broadcast %68 : f32 to vector<24x24xf32>
    %70 = arith.mulf %67, %69 : vector<24x24xf32>
    %71 = arith.addf %66, %70 : vector<24x24xf32>
    %72 = vector.extract_strided_slice %4 {offsets = [2, 0], sizes = [24, 24], strides = [1, 1]} : vector<28x24xf32> to vector<24x24xf32>
    %c13 = arith.constant 13 : index
    %73 = memref.load %arg1[%c13] : memref<40xf32, #tpu.memory_space<smem>>
    %74 = vector.broadcast %73 : f32 to vector<24x24xf32>
    %75 = arith.mulf %72, %74 : vector<24x24xf32>
    %76 = arith.addf %71, %75 : vector<24x24xf32>
    %77 = vector.extract_strided_slice %5 {offsets = [2, 0], sizes = [24, 24], strides = [1, 1]} : vector<28x24xf32> to vector<24x24xf32>
    %c14 = arith.constant 14 : index
    %78 = memref.load %arg1[%c14] : memref<40xf32, #tpu.memory_space<smem>>
    %79 = vector.broadcast %78 : f32 to vector<24x24xf32>
    %80 = arith.mulf %77, %79 : vector<24x24xf32>
    %81 = arith.addf %76, %80 : vector<24x24xf32>
    %82 = vector.extract_strided_slice %1 {offsets = [3, 0], sizes = [24, 24], strides = [1, 1]} : vector<28x24xf32> to vector<24x24xf32>
    %c15 = arith.constant 15 : index
    %83 = memref.load %arg1[%c15] : memref<40xf32, #tpu.memory_space<smem>>
    %84 = vector.broadcast %83 : f32 to vector<24x24xf32>
    %85 = arith.mulf %82, %84 : vector<24x24xf32>
    %86 = arith.addf %81, %85 : vector<24x24xf32>
    %87 = vector.extract_strided_slice %2 {offsets = [3, 0], sizes = [24, 24], strides = [1, 1]} : vector<28x24xf32> to vector<24x24xf32>
    %c16 = arith.constant 16 : index
    %88 = memref.load %arg1[%c16] : memref<40xf32, #tpu.memory_space<smem>>
    %89 = vector.broadcast %88 : f32 to vector<24x24xf32>
    %90 = arith.mulf %87, %89 : vector<24x24xf32>
    %91 = arith.addf %86, %90 : vector<24x24xf32>
    %92 = vector.extract_strided_slice %3 {offsets = [3, 0], sizes = [24, 24], strides = [1, 1]} : vector<28x24xf32> to vector<24x24xf32>
    %c17 = arith.constant 17 : index
    %93 = memref.load %arg1[%c17] : memref<40xf32, #tpu.memory_space<smem>>
    %94 = vector.broadcast %93 : f32 to vector<24x24xf32>
    %95 = arith.mulf %92, %94 : vector<24x24xf32>
    %96 = arith.addf %91, %95 : vector<24x24xf32>
    %97 = vector.extract_strided_slice %4 {offsets = [3, 0], sizes = [24, 24], strides = [1, 1]} : vector<28x24xf32> to vector<24x24xf32>
    %c18 = arith.constant 18 : index
    %98 = memref.load %arg1[%c18] : memref<40xf32, #tpu.memory_space<smem>>
    %99 = vector.broadcast %98 : f32 to vector<24x24xf32>
    %100 = arith.mulf %97, %99 : vector<24x24xf32>
    %101 = arith.addf %96, %100 : vector<24x24xf32>
    %102 = vector.extract_strided_slice %5 {offsets = [3, 0], sizes = [24, 24], strides = [1, 1]} : vector<28x24xf32> to vector<24x24xf32>
    %c19 = arith.constant 19 : index
    %103 = memref.load %arg1[%c19] : memref<40xf32, #tpu.memory_space<smem>>
    %104 = vector.broadcast %103 : f32 to vector<24x24xf32>
    %105 = arith.mulf %102, %104 : vector<24x24xf32>
    %106 = arith.addf %101, %105 : vector<24x24xf32>
    %107 = vector.extract_strided_slice %1 {offsets = [4, 0], sizes = [24, 24], strides = [1, 1]} : vector<28x24xf32> to vector<24x24xf32>
    %c20 = arith.constant 20 : index
    %108 = memref.load %arg1[%c20] : memref<40xf32, #tpu.memory_space<smem>>
    %109 = vector.broadcast %108 : f32 to vector<24x24xf32>
    %110 = arith.mulf %107, %109 : vector<24x24xf32>
    %111 = arith.addf %106, %110 : vector<24x24xf32>
    %112 = vector.extract_strided_slice %2 {offsets = [4, 0], sizes = [24, 24], strides = [1, 1]} : vector<28x24xf32> to vector<24x24xf32>
    %c21 = arith.constant 21 : index
    %113 = memref.load %arg1[%c21] : memref<40xf32, #tpu.memory_space<smem>>
    %114 = vector.broadcast %113 : f32 to vector<24x24xf32>
    %115 = arith.mulf %112, %114 : vector<24x24xf32>
    %116 = arith.addf %111, %115 : vector<24x24xf32>
    %117 = vector.extract_strided_slice %3 {offsets = [4, 0], sizes = [24, 24], strides = [1, 1]} : vector<28x24xf32> to vector<24x24xf32>
    %c22 = arith.constant 22 : index
    %118 = memref.load %arg1[%c22] : memref<40xf32, #tpu.memory_space<smem>>
    %119 = vector.broadcast %118 : f32 to vector<24x24xf32>
    %120 = arith.mulf %117, %119 : vector<24x24xf32>
    %121 = arith.addf %116, %120 : vector<24x24xf32>
    %122 = vector.extract_strided_slice %4 {offsets = [4, 0], sizes = [24, 24], strides = [1, 1]} : vector<28x24xf32> to vector<24x24xf32>
    %c23 = arith.constant 23 : index
    %123 = memref.load %arg1[%c23] : memref<40xf32, #tpu.memory_space<smem>>
    %124 = vector.broadcast %123 : f32 to vector<24x24xf32>
    %125 = arith.mulf %122, %124 : vector<24x24xf32>
    %126 = arith.addf %121, %125 : vector<24x24xf32>
    %127 = vector.extract_strided_slice %5 {offsets = [4, 0], sizes = [24, 24], strides = [1, 1]} : vector<28x24xf32> to vector<24x24xf32>
    %c24 = arith.constant 24 : index
    %128 = memref.load %arg1[%c24] : memref<40xf32, #tpu.memory_space<smem>>
    %129 = vector.broadcast %128 : f32 to vector<24x24xf32>
    %130 = arith.mulf %127, %129 : vector<24x24xf32>
    %131 = arith.addf %126, %130 : vector<24x24xf32>
    %c25 = arith.constant 25 : index
    %132 = memref.load %arg1[%c25] : memref<40xf32, #tpu.memory_space<smem>>
    %133 = vector.broadcast %132 : f32 to vector<24x24xf32>
    %134 = arith.addf %131, %133 : vector<24x24xf32>
    %cst_2 = arith.constant 0.000000e+00 : f32
    %135 = vector.broadcast %cst_2 : f32 to vector<24x24xf32>
    %136 = arith.maximumf %134, %135 : vector<24x24xf32>
    %137 = vector.extract_strided_slice %136 {offsets = [0, 0], sizes = [23, 24], strides = [1, 1]} : vector<24x24xf32> to vector<23x24xf32>
    %138 = vector.extract_strided_slice %136 {offsets = [1, 0], sizes = [23, 24], strides = [1, 1]} : vector<24x24xf32> to vector<23x24xf32>
    %139 = arith.maximumf %137, %138 : vector<23x24xf32>
    %140 = vector.extract_strided_slice %139 {offsets = [0, 0], sizes = [23, 23], strides = [1, 1]} : vector<23x24xf32> to vector<23x23xf32>
    %141 = vector.extract_strided_slice %139 {offsets = [0, 1], sizes = [23, 23], strides = [1, 1]} : vector<23x24xf32> to vector<23x23xf32>
    %142 = arith.maximumf %140, %141 : vector<23x23xf32>
    %143 = vector.extract_strided_slice %142 {offsets = [0, 0], sizes = [23, 19], strides = [1, 1]} : vector<23x23xf32> to vector<23x19xf32>
    %144 = vector.extract_strided_slice %142 {offsets = [0, 2], sizes = [23, 19], strides = [1, 1]} : vector<23x23xf32> to vector<23x19xf32>
    %145 = vector.extract_strided_slice %142 {offsets = [0, 4], sizes = [23, 19], strides = [1, 1]} : vector<23x23xf32> to vector<23x19xf32>
    %cst_3 = arith.constant 0.000000e+00 : f32
    %146 = vector.broadcast %cst_3 : f32 to vector<19x19xf32>
    %147 = vector.extract_strided_slice %143 {offsets = [0, 0], sizes = [19, 19], strides = [1, 1]} : vector<23x19xf32> to vector<19x19xf32>
    %c26 = arith.constant 26 : index
    %148 = memref.load %arg1[%c26] : memref<40xf32, #tpu.memory_space<smem>>
    %149 = vector.broadcast %148 : f32 to vector<19x19xf32>
    %150 = arith.mulf %147, %149 : vector<19x19xf32>
    %151 = arith.addf %146, %150 : vector<19x19xf32>
    %152 = vector.extract_strided_slice %144 {offsets = [0, 0], sizes = [19, 19], strides = [1, 1]} : vector<23x19xf32> to vector<19x19xf32>
    %c27 = arith.constant 27 : index
    %153 = memref.load %arg1[%c27] : memref<40xf32, #tpu.memory_space<smem>>
    %154 = vector.broadcast %153 : f32 to vector<19x19xf32>
    %155 = arith.mulf %152, %154 : vector<19x19xf32>
    %156 = arith.addf %151, %155 : vector<19x19xf32>
    %157 = vector.extract_strided_slice %145 {offsets = [0, 0], sizes = [19, 19], strides = [1, 1]} : vector<23x19xf32> to vector<19x19xf32>
    %c28 = arith.constant 28 : index
    %158 = memref.load %arg1[%c28] : memref<40xf32, #tpu.memory_space<smem>>
    %159 = vector.broadcast %158 : f32 to vector<19x19xf32>
    %160 = arith.mulf %157, %159 : vector<19x19xf32>
    %161 = arith.addf %156, %160 : vector<19x19xf32>
    %162 = vector.extract_strided_slice %143 {offsets = [2, 0], sizes = [19, 19], strides = [1, 1]} : vector<23x19xf32> to vector<19x19xf32>
    %c29 = arith.constant 29 : index
    %163 = memref.load %arg1[%c29] : memref<40xf32, #tpu.memory_space<smem>>
    %164 = vector.broadcast %163 : f32 to vector<19x19xf32>
    %165 = arith.mulf %162, %164 : vector<19x19xf32>
    %166 = arith.addf %161, %165 : vector<19x19xf32>
    %167 = vector.extract_strided_slice %144 {offsets = [2, 0], sizes = [19, 19], strides = [1, 1]} : vector<23x19xf32> to vector<19x19xf32>
    %c30 = arith.constant 30 : index
    %168 = memref.load %arg1[%c30] : memref<40xf32, #tpu.memory_space<smem>>
    %169 = vector.broadcast %168 : f32 to vector<19x19xf32>
    %170 = arith.mulf %167, %169 : vector<19x19xf32>
    %171 = arith.addf %166, %170 : vector<19x19xf32>
    %172 = vector.extract_strided_slice %145 {offsets = [2, 0], sizes = [19, 19], strides = [1, 1]} : vector<23x19xf32> to vector<19x19xf32>
    %c31 = arith.constant 31 : index
    %173 = memref.load %arg1[%c31] : memref<40xf32, #tpu.memory_space<smem>>
    %174 = vector.broadcast %173 : f32 to vector<19x19xf32>
    %175 = arith.mulf %172, %174 : vector<19x19xf32>
    %176 = arith.addf %171, %175 : vector<19x19xf32>
    %177 = vector.extract_strided_slice %143 {offsets = [4, 0], sizes = [19, 19], strides = [1, 1]} : vector<23x19xf32> to vector<19x19xf32>
    %c32 = arith.constant 32 : index
    %178 = memref.load %arg1[%c32] : memref<40xf32, #tpu.memory_space<smem>>
    %179 = vector.broadcast %178 : f32 to vector<19x19xf32>
    %180 = arith.mulf %177, %179 : vector<19x19xf32>
    %181 = arith.addf %176, %180 : vector<19x19xf32>
    %182 = vector.extract_strided_slice %144 {offsets = [4, 0], sizes = [19, 19], strides = [1, 1]} : vector<23x19xf32> to vector<19x19xf32>
    %c33 = arith.constant 33 : index
    %183 = memref.load %arg1[%c33] : memref<40xf32, #tpu.memory_space<smem>>
    %184 = vector.broadcast %183 : f32 to vector<19x19xf32>
    %185 = arith.mulf %182, %184 : vector<19x19xf32>
    %186 = arith.addf %181, %185 : vector<19x19xf32>
    %187 = vector.extract_strided_slice %145 {offsets = [4, 0], sizes = [19, 19], strides = [1, 1]} : vector<23x19xf32> to vector<19x19xf32>
    %c34 = arith.constant 34 : index
    %188 = memref.load %arg1[%c34] : memref<40xf32, #tpu.memory_space<smem>>
    %189 = vector.broadcast %188 : f32 to vector<19x19xf32>
    %190 = arith.mulf %187, %189 : vector<19x19xf32>
    %191 = arith.addf %186, %190 : vector<19x19xf32>
    %c35 = arith.constant 35 : index
    %192 = memref.load %arg1[%c35] : memref<40xf32, #tpu.memory_space<smem>>
    %193 = vector.broadcast %192 : f32 to vector<19x19xf32>
    %194 = arith.addf %191, %193 : vector<19x19xf32>
    %cst_4 = arith.constant 0.000000e+00 : f32
    %195 = vector.broadcast %cst_4 : f32 to vector<19x19xf32>
    %196 = arith.maximumf %194, %195 : vector<19x19xf32>
    %197 = vector.extract_strided_slice %196 {offsets = [0, 0], sizes = [17, 19], strides = [1, 1]} : vector<19x19xf32> to vector<17x19xf32>
    %198 = vector.extract_strided_slice %196 {offsets = [2, 0], sizes = [17, 19], strides = [1, 1]} : vector<19x19xf32> to vector<17x19xf32>
    %199 = arith.maximumf %197, %198 : vector<17x19xf32>
    %200 = vector.extract_strided_slice %199 {offsets = [0, 0], sizes = [17, 17], strides = [1, 1]} : vector<17x19xf32> to vector<17x17xf32>
    %201 = vector.extract_strided_slice %199 {offsets = [0, 2], sizes = [17, 17], strides = [1, 1]} : vector<17x19xf32> to vector<17x17xf32>
    %202 = arith.maximumf %200, %201 : vector<17x17xf32>
    %203 = tpu.iota {dimensions = array<i32: 1>} : vector<1x128xi32>
    %cst_5 = arith.constant 0.000000e+00 : f32
    %204 = vector.broadcast %cst_5 : f32 to vector<1x128xf32>
    %c0_6 = arith.constant 0 : index
    %c0_7 = arith.constant 0 : index
    %c0_8 = arith.constant 0 : index
    %205 = vector.load %arg2[%c0_6, %c0_7, %c0_8] : memref<4x17x17xf32, #tpu.memory_space<vmem>>, vector<1x17x17xf32>
    %206 = vector.shape_cast %205 : vector<1x17x17xf32> to vector<17x17xf32>
    %207 = arith.mulf %202, %206 : vector<17x17xf32>
    %208 = vector.shape_cast %207 : vector<17x17xf32> to vector<1x17x17xf32>
    %cst_9 = arith.constant dense<0.000000e+00> : vector<1xf32>
    %209 = vector.multi_reduction <add>, %208, %cst_9 [1, 2] : vector<1x17x17xf32> to vector<1xf32>
    %210 = vector.shape_cast %209 : vector<1xf32> to vector<1x1x1xf32>
    %211 = vector.extract %210[0, 0, 0] : f32 from vector<1x1x1xf32>
    %c36 = arith.constant 36 : index
    %212 = memref.load %arg1[%c36] : memref<40xf32, #tpu.memory_space<smem>>
    %213 = arith.addf %211, %212 : f32
    %c0_i32 = arith.constant 0 : i32
    %214 = vector.broadcast %c0_i32 : i32 to vector<1x128xi32>
    %215 = arith.cmpi eq, %203, %214 : vector<1x128xi32>
    %216 = arith.extui %215 : vector<1x128xi1> to vector<1x128xi32>
    %217 = arith.sitofp %216 : vector<1x128xi32> to vector<1x128xf32>
    %218 = vector.broadcast %213 : f32 to vector<1x128xf32>
    %219 = arith.mulf %218, %217 : vector<1x128xf32>
    %220 = arith.addf %204, %219 : vector<1x128xf32>
    %c1_10 = arith.constant 1 : index
    %c0_11 = arith.constant 0 : index
    %c0_12 = arith.constant 0 : index
    %221 = vector.load %arg2[%c1_10, %c0_11, %c0_12] : memref<4x17x17xf32, #tpu.memory_space<vmem>>, vector<1x17x17xf32>
    %222 = vector.shape_cast %221 : vector<1x17x17xf32> to vector<17x17xf32>
    %223 = arith.mulf %202, %222 : vector<17x17xf32>
    %224 = vector.shape_cast %223 : vector<17x17xf32> to vector<1x17x17xf32>
    %cst_13 = arith.constant dense<0.000000e+00> : vector<1xf32>
    %225 = vector.multi_reduction <add>, %224, %cst_13 [1, 2] : vector<1x17x17xf32> to vector<1xf32>
    %226 = vector.shape_cast %225 : vector<1xf32> to vector<1x1x1xf32>
    %227 = vector.extract %226[0, 0, 0] : f32 from vector<1x1x1xf32>
    %c37 = arith.constant 37 : index
    %228 = memref.load %arg1[%c37] : memref<40xf32, #tpu.memory_space<smem>>
    %229 = arith.addf %227, %228 : f32
    %c1_i32 = arith.constant 1 : i32
    %230 = vector.broadcast %c1_i32 : i32 to vector<1x128xi32>
    %231 = arith.cmpi eq, %203, %230 : vector<1x128xi32>
    %232 = arith.extui %231 : vector<1x128xi1> to vector<1x128xi32>
    %233 = arith.sitofp %232 : vector<1x128xi32> to vector<1x128xf32>
    %234 = vector.broadcast %229 : f32 to vector<1x128xf32>
    %235 = arith.mulf %234, %233 : vector<1x128xf32>
    %236 = arith.addf %220, %235 : vector<1x128xf32>
    %c2_14 = arith.constant 2 : index
    %c0_15 = arith.constant 0 : index
    %c0_16 = arith.constant 0 : index
    %237 = vector.load %arg2[%c2_14, %c0_15, %c0_16] : memref<4x17x17xf32, #tpu.memory_space<vmem>>, vector<1x17x17xf32>
    %238 = vector.shape_cast %237 : vector<1x17x17xf32> to vector<17x17xf32>
    %239 = arith.mulf %202, %238 : vector<17x17xf32>
    %240 = vector.shape_cast %239 : vector<17x17xf32> to vector<1x17x17xf32>
    %cst_17 = arith.constant dense<0.000000e+00> : vector<1xf32>
    %241 = vector.multi_reduction <add>, %240, %cst_17 [1, 2] : vector<1x17x17xf32> to vector<1xf32>
    %242 = vector.shape_cast %241 : vector<1xf32> to vector<1x1x1xf32>
    %243 = vector.extract %242[0, 0, 0] : f32 from vector<1x1x1xf32>
    %c38 = arith.constant 38 : index
    %244 = memref.load %arg1[%c38] : memref<40xf32, #tpu.memory_space<smem>>
    %245 = arith.addf %243, %244 : f32
    %c2_i32 = arith.constant 2 : i32
    %246 = vector.broadcast %c2_i32 : i32 to vector<1x128xi32>
    %247 = arith.cmpi eq, %203, %246 : vector<1x128xi32>
    %248 = arith.extui %247 : vector<1x128xi1> to vector<1x128xi32>
    %249 = arith.sitofp %248 : vector<1x128xi32> to vector<1x128xf32>
    %250 = vector.broadcast %245 : f32 to vector<1x128xf32>
    %251 = arith.mulf %250, %249 : vector<1x128xf32>
    %252 = arith.addf %236, %251 : vector<1x128xf32>
    %c3_18 = arith.constant 3 : index
    %c0_19 = arith.constant 0 : index
    %c0_20 = arith.constant 0 : index
    %253 = vector.load %arg2[%c3_18, %c0_19, %c0_20] : memref<4x17x17xf32, #tpu.memory_space<vmem>>, vector<1x17x17xf32>
    %254 = vector.shape_cast %253 : vector<1x17x17xf32> to vector<17x17xf32>
    %255 = arith.mulf %202, %254 : vector<17x17xf32>
    %256 = vector.shape_cast %255 : vector<17x17xf32> to vector<1x17x17xf32>
    %cst_21 = arith.constant dense<0.000000e+00> : vector<1xf32>
    %257 = vector.multi_reduction <add>, %256, %cst_21 [1, 2] : vector<1x17x17xf32> to vector<1xf32>
    %258 = vector.shape_cast %257 : vector<1xf32> to vector<1x1x1xf32>
    %259 = vector.extract %258[0, 0, 0] : f32 from vector<1x1x1xf32>
    %c39 = arith.constant 39 : index
    %260 = memref.load %arg1[%c39] : memref<40xf32, #tpu.memory_space<smem>>
    %261 = arith.addf %259, %260 : f32
    %c3_i32 = arith.constant 3 : i32
    %262 = vector.broadcast %c3_i32 : i32 to vector<1x128xi32>
    %263 = arith.cmpi eq, %203, %262 : vector<1x128xi32>
    %264 = arith.extui %263 : vector<1x128xi1> to vector<1x128xi32>
    %265 = arith.sitofp %264 : vector<1x128xi32> to vector<1x128xf32>
    %266 = vector.broadcast %261 : f32 to vector<1x128xf32>
    %267 = arith.mulf %266, %265 : vector<1x128xf32>
    %268 = arith.addf %252, %267 : vector<1x128xf32>
    %cst_22 = arith.constant 0.000000e+00 : f32
    %269 = vector.broadcast %cst_22 : f32 to vector<1x128xf32>
    %270 = arith.maximumf %268, %269 : vector<1x128xf32>
    %271 = vector.shape_cast %270 : vector<1x128xf32> to vector<1x1x128xf32>
    %cst_23 = arith.constant dense<0xFF800000> : vector<1xf32>
    %272 = vector.multi_reduction <maximumf>, %271, %cst_23 [1, 2] : vector<1x1x128xf32> to vector<1xf32>
    %273 = vector.shape_cast %272 : vector<1xf32> to vector<1x1x1xf32>
    %274 = vector.extract %273[0, 0, 0] : f32 from vector<1x1x1xf32>
    %c4_i32 = arith.constant 4 : i32
    %275 = vector.broadcast %c4_i32 : i32 to vector<1x128xi32>
    %276 = arith.cmpi slt, %203, %275 : vector<1x128xi32>
    %277 = vector.broadcast %274 : f32 to vector<1x128xf32>
    %278 = arith.subf %270, %277 : vector<1x128xf32>
    %279 = math.exp %278 : vector<1x128xf32>
    %cst_24 = arith.constant 0.000000e+00 : f32
    %280 = vector.broadcast %cst_24 : f32 to vector<1x128xf32>
    %281 = arith.select %276, %279, %280 : vector<1x128xi1>, vector<1x128xf32>
    %282 = vector.shape_cast %281 : vector<1x128xf32> to vector<1x1x128xf32>
    %cst_25 = arith.constant dense<0.000000e+00> : vector<1xf32>
    %283 = vector.multi_reduction <add>, %282, %cst_25 [1, 2] : vector<1x1x128xf32> to vector<1xf32>
    %284 = vector.shape_cast %283 : vector<1xf32> to vector<1x1x1xf32>
    %285 = vector.extract %284[0, 0, 0] : f32 from vector<1x1x1xf32>
    %286 = vector.broadcast %285 : f32 to vector<1x128xf32>
    %287 = arith.divf %281, %286 : vector<1x128xf32>
    %c0_26 = arith.constant 0 : index
    %c0_27 = arith.constant 0 : index
    %288 = vector.load %arg3[%c0_26, %c0_27] : memref<1x128xf32, #tpu.memory_space<vmem>>, vector<1x128xf32>
    tpu.vector_store %arg3[%c0_26, %c0_27], %287 {strides = array<i32>} : memref<1x128xf32, #tpu.memory_space<vmem>>, vector<1x128xf32>,
    return
  }
}

</mosaic_0001>

<llo_original>
// kernel: net_forward.1
$region0: #{net_forward.1}
  #allocation0 [shape = 'u32[]', space=smem, size = 0x4, offset = 0x4, fixed_abs, tag = 'smem constant byte address 0x4 - core index']
  #allocation1 [shape = 'u32[144,128]{1,0:T(1,128)}', space=vmem, size = 0x12000, scoped, tag = 'internal scratch']
  %s0 = inlined_call_operand.vmem [shape: f32[28,28], index: 0, kind: input, shape index: {}]
  %s1 = inlined_call_operand.vmem [shape: f32[40], index: 1, kind: input, shape index: {}]
  %s2 = inlined_call_operand.vmem [shape: f32[4,17,17], index: 2, kind: input, shape index: {}]
  %s3 = inlined_call_operand.vmem [shape: f32[1,128], index: 3, kind: output, shape index: {}]
  %s4 = sld [smem:[#allocation0]]
  $region26: #{net_forward.1} parent=0
    _
  %s6 = ssub.s32 1, %s4
  %s7 = scalar_select 0, %s6, %s4
  $region1: #{net_forward.1} parent=0
    #allocation2 [shape = 'u8[512]{0}', space=smem, size = 0x200, scoped, tag = 'input window, operand 1, single buffered']
    #allocation3 [shape = 's32[1]{0}', space=sflag, size = 0x4, scoped, tag = 'scoped memory for net_forward.1']
    %8 = vsyncpa [#allocation3], 0
    // Predicated region
    $region2: #{net_forward.1} parent=1 // pred_check
      _
    $region3: #{net_forward.1} parent=1 // pred_check_branch
      %10 = sbr.rel (0) target = $region5
    $region4: #{net_forward.1} parent=1 // pred_region
      _
    $region5: #{net_forward.1} parent=1 // pred_fallthru
      _
    // Predicated region
    $region6: #{net_forward.1} parent=1 // pred_check
      _
    $region7: #{net_forward.1} parent=1 // pred_check_branch
      %12 = sbr.rel (0) target = $region9
    $region8: #{net_forward.1} parent=1 // pred_region
      %s14 = ssub.s32 16, 16
      %15 = vsyncadd [#allocation3], %s14
      %s17 = sshll.u32 %s1, 4
      %s18 = int_to_ptr.vmem [resolvable:$true] %s17
      %20 = dma.vmem_to_smem %s18, 16, [#allocation2], [#allocation3]
    $region9: #{net_forward.1} parent=1 // pred_fallthru
      _
    // Predicated region
    $region10: #{net_forward.1} parent=1 // pred_check
      _
    $region11: #{net_forward.1} parent=1 // pred_check_branch
      %22 = sbr.rel (0) target = $region13
    $region12: #{net_forward.1} parent=1 // pred_region
      _
    $region13: #{net_forward.1} parent=1 // pred_fallthru
      _
    // Predicated region
    $region14: #{net_forward.1} parent=1 // pred_check
      _
    $region15: #{net_forward.1} parent=1 // pred_check_branch
      %24 = sbr.rel (0) target = $region17
    $region16: #{net_forward.1} parent=1 // pred_region
      %25 = dma.done [#allocation3], 16
    $region17: #{net_forward.1} parent=1 // pred_fallthru
      _
    %26 = sfence
    %v27 = vld [vmem:[%s0] sm:$0xff]
    %v28 = vld [vmem:[%s0 + $0x8] sm:$0xff]
    %v29 = vld [vmem:[%s0 + $0x10] sm:$0xff]
    %v30 = vld [vmem:[%s0 + $0x18] sm:$0xf]
    %s31 = sld [smem:[#allocation2]]
    %v32 = vstv %s31
    %v33 = vmul.f32 %v27, %v32
    %v34 = vmul.f32 %v28, %v32
    %v35 = vmul.f32 %v29, %v32
    %v36 = vadd.f32 %v33, 0.0
    %v37 = vadd.f32 %v34, 0.0
    %v38 = vadd.f32 %v35, 0.0
    %s39 = sld [smem:[#allocation2 + $0x1]]
    %v40 = vstv %s39
    %v41 = vmul.f32 %v27, %v40
    %v42 = vmul.f32 %v28, %v40
    %v43 = vmul.f32 %v29, %v40
    %47 = vrot.lane.b32.xlu0 %v41, 127
    %v48 = vpop.permute.xlu0 %47
    %49 = vrot.lane.b32.xlu0 %v42, 127
    %v50 = vpop.permute.xlu0 %49
    %51 = vrot.lane.b32.xlu0 %v43, 127
    %v52 = vpop.permute.xlu0 %51
    %v56 = vadd.f32 %v36, %v48
    %v57 = vadd.f32 %v37, %v50
    %v58 = vadd.f32 %v38, %v52
    %s59 = sld [smem:[#allocation2 + $0x2]]
    %v60 = vstv %s59
    %v61 = vmul.f32 %v27, %v60
    %v62 = vmul.f32 %v28, %v60
    %v63 = vmul.f32 %v29, %v60
    %67 = vrot.lane.b32.xlu0 %v61, 126
    %v68 = vpop.permute.xlu0 %67
    %69 = vrot.lane.b32.xlu0 %v62, 126
    %v70 = vpop.permute.xlu0 %69
    %71 = vrot.lane.b32.xlu0 %v63, 126
    %v72 = vpop.permute.xlu0 %71
    %v76 = vadd.f32 %v56, %v68
    %v77 = vadd.f32 %v57, %v70
    %v78 = vadd.f32 %v58, %v72
    %s79 = sld [smem:[#allocation2 + $0x3]]
    %v80 = vstv %s79
    %v81 = vmul.f32 %v27, %v80
    %v82 = vmul.f32 %v28, %v80
    %v83 = vmul.f32 %v29, %v80
    %87 = vrot.lane.b32.xlu0 %v81, 125
    %v88 = vpop.permute.xlu0 %87
    %89 = vrot.lane.b32.xlu0 %v82, 125
    %v90 = vpop.permute.xlu0 %89
    %91 = vrot.lane.b32.xlu0 %v83, 125
    %v92 = vpop.permute.xlu0 %91
    %v96 = vadd.f32 %v76, %v88
    %v97 = vadd.f32 %v77, %v90
    %v98 = vadd.f32 %v78, %v92
    %s99 = sld [smem:[#allocation2 + $0x4]]
    %v100 = vstv %s99
    %v101 = vmul.f32 %v27, %v100
    %v102 = vmul.f32 %v28, %v100
    %v103 = vmul.f32 %v29, %v100
    %107 = vrot.lane.b32.xlu0 %v101, 124
    %v108 = vpop.permute.xlu0 %107
    %109 = vrot.lane.b32.xlu0 %v102, 124
    %v110 = vpop.permute.xlu0 %109
    %111 = vrot.lane.b32.xlu0 %v103, 124
    %v112 = vpop.permute.xlu0 %111
    %v116 = vadd.f32 %v96, %v108
    %v117 = vadd.f32 %v97, %v110
    %v118 = vadd.f32 %v98, %v112
    %s119 = sld [smem:[#allocation2 + $0x5]]
    %v120 = vstv %s119
    %v121 = vmul.f32 %v27, %v120
    %v122 = vmul.f32 %v28, %v120
    %v123 = vmul.f32 %v29, %v120
    %v124 = vmul.f32 %v30, %v120
    %vm129 = vcmask 1046528
    %v130 = vrot.slane %v121, 1
    %v131 = vrot.slane %v122, 1
    %v132 = vsel %vm129, %v130, %v131
    %v133 = vrot.slane %v123, 1
    %v134 = vsel %vm129, %v131, %v133
    %v135 = vrot.slane %v124, 1
    %v136 = vsel %vm129, %v133, %v135
    %v140 = vadd.f32 %v116, %v132
    %v141 = vadd.f32 %v117, %v134
    %v142 = vadd.f32 %v118, %v136
    %s143 = sld [smem:[#allocation2 + $0x6]]
    %v144 = vstv %s143
    %v145 = vmul.f32 %v27, %v144
    %v146 = vmul.f32 %v28, %v144
    %v147 = vmul.f32 %v29, %v144
    %v148 = vmul.f32 %v30, %v144
    %v153 = vrot.slane %v145, 1
    %v154 = vrot.slane %v146, 1
    %v155 = vsel %vm129, %v153, %v154
    %v156 = vrot.slane %v147, 1
    %v157 = vsel %vm129, %v154, %v156
    %v158 = vrot.slane %v148, 1
    %v159 = vsel %vm129, %v156, %v158
    %160 = vrot.lane.b32.xlu0 %v155, 127
    %v161 = vpop.permute.xlu0 %160
    %162 = vrot.lane.b32.xlu0 %v157, 127
    %v163 = vpop.permute.xlu0 %162
    %164 = vrot.lane.b32.xlu0 %v159, 127
    %v165 = vpop.permute.xlu0 %164
    %v169 = vadd.f32 %v140, %v161
    %v170 = vadd.f32 %v141, %v163
    %v171 = vadd.f32 %v142, %v165
    %s172 = sld [smem:[#allocation2 + $0x7]]
    %v173 = vstv %s172
    %v174 = vmul.f32 %v27, %v173
    %v175 = vmul.f32 %v28, %v173
    %v176 = vmul.f32 %v29, %v173
    %v177 = vmul.f32 %v30, %v173
    %v182 = vrot.slane %v174, 1
    %v183 = vrot.slane %v175, 1
    %v184 = vsel %vm129, %v182, %v183
    %v185 = vrot.slane %v176, 1
    %v186 = vsel %vm129, %v183, %v185
    %v187 = vrot.slane %v177, 1
    %v188 = vsel %vm129, %v185, %v187
    %189 = vrot.lane.b32.xlu0 %v184, 126
    %v190 = vpop.permute.xlu0 %189
    %191 = vrot.lane.b32.xlu0 %v186, 126
    %v192 = vpop.permute.xlu0 %191
    %193 = vrot.lane.b32.xlu0 %v188, 126
    %v194 = vpop.permute.xlu0 %193
    %v198 = vadd.f32 %v169, %v190
    %v199 = vadd.f32 %v170, %v192
    %v200 = vadd.f32 %v171, %v194
    %s201 = sld [smem:[#allocation2 + $0x8]]
    %v202 = vstv %s201
    %v203 = vmul.f32 %v27, %v202
    %v204 = vmul.f32 %v28, %v202
    %v205 = vmul.f32 %v29, %v202
    %v206 = vmul.f32 %v30, %v202
    %v211 = vrot.slane %v203, 1
    %v212 = vrot.slane %v204, 1
    %v213 = vsel %vm129, %v211, %v212
    %v214 = vrot.slane %v205, 1
    %v215 = vsel %vm129, %v212, %v214
    %v216 = vrot.slane %v206, 1
    %v217 = vsel %vm129, %v214, %v216
    %218 = vrot.lane.b32.xlu0 %v213, 125
    %v219 = vpop.permute.xlu0 %218
    %220 = vrot.lane.b32.xlu0 %v215, 125
    %v221 = vpop.permute.xlu0 %220
    %222 = vrot.lane.b32.xlu0 %v217, 125
    %v223 = vpop.permute.xlu0 %222
    %v227 = vadd.f32 %v198, %v219
    %v228 = vadd.f32 %v199, %v221
    %v229 = vadd.f32 %v200, %v223
    %s230 = sld [smem:[#allocation2 + $0x9]]
    %v231 = vstv %s230
    %v232 = vmul.f32 %v27, %v231
    %v233 = vmul.f32 %v28, %v231
    %v234 = vmul.f32 %v29, %v231
    %v235 = vmul.f32 %v30, %v231
    %v240 = vrot.slane %v232, 1
    %v241 = vrot.slane %v233, 1
    %v242 = vsel %vm129, %v240, %v241
    %v243 = vrot.slane %v234, 1
    %v244 = vsel %vm129, %v241, %v243
    %v245 = vrot.slane %v235, 1
    %v246 = vsel %vm129, %v243, %v245
    %247 = vrot.lane.b32.xlu0 %v242, 124
    %v248 = vpop.permute.xlu0 %247
    %249 = vrot.lane.b32.xlu0 %v244, 124
    %v250 = vpop.permute.xlu0 %249
    %251 = vrot.lane.b32.xlu0 %v246, 124
    %v252 = vpop.permute.xlu0 %251
    %v256 = vadd.f32 %v227, %v248
    %v257 = vadd.f32 %v228, %v250
    %v258 = vadd.f32 %v229, %v252
    %s259 = sld [smem:[#allocation2 + $0xa]]
    %v260 = vstv %s259
    %v261 = vmul.f32 %v27, %v260
    %v262 = vmul.f32 %v28, %v260
    %v263 = vmul.f32 %v29, %v260
    %v264 = vmul.f32 %v30, %v260
    %vm269 = vcmask 1045504
    %v270 = vrot.slane %v261, 2
    %v271 = vrot.slane %v262, 2
    %v272 = vsel %vm269, %v270, %v271
    %v273 = vrot.slane %v263, 2
    %v274 = vsel %vm269, %v271, %v273
    %v275 = vrot.slane %v264, 2
    %v276 = vsel %vm269, %v273, %v275
    %v280 = vadd.f32 %v256, %v272
    %v281 = vadd.f32 %v257, %v274
    %v282 = vadd.f32 %v258, %v276
    %s283 = sld [smem:[#allocation2 + $0xb]]
    %v284 = vstv %s283
    %v285 = vmul.f32 %v27, %v284
    %v286 = vmul.f32 %v28, %v284
    %v287 = vmul.f32 %v29, %v284
    %v288 = vmul.f32 %v30, %v284
    %v293 = vrot.slane %v285, 2
    %v294 = vrot.slane %v286, 2
    %v295 = vsel %vm269, %v293, %v294
    %v296 = vrot.slane %v287, 2
    %v297 = vsel %vm269, %v294, %v296
    %v298 = vrot.slane %v288, 2
    %v299 = vsel %vm269, %v296, %v298
    %300 = vrot.lane.b32.xlu0 %v295, 127
    %v301 = vpop.permute.xlu0 %300
    %302 = vrot.lane.b32.xlu0 %v297, 127
    %v303 = vpop.permute.xlu0 %302
    %304 = vrot.lane.b32.xlu0 %v299, 127
    %v305 = vpop.permute.xlu0 %304
    %v309 = vadd.f32 %v280, %v301
    %v310 = vadd.f32 %v281, %v303
    %v311 = vadd.f32 %v282, %v305
    %s312 = sld [smem:[#allocation2 + $0xc]]
    %v313 = vstv %s312
    %v314 = vmul.f32 %v27, %v313
    %v315 = vmul.f32 %v28, %v313
    %v316 = vmul.f32 %v29, %v313
    %v317 = vmul.f32 %v30, %v313
    %v322 = vrot.slane %v314, 2
    %v323 = vrot.slane %v315, 2
    %v324 = vsel %vm269, %v322, %v323
    %v325 = vrot.slane %v316, 2
    %v326 = vsel %vm269, %v323, %v325
    %v327 = vrot.slane %v317, 2
    %v328 = vsel %vm269, %v325, %v327
    %329 = vrot.lane.b32.xlu0 %v324, 126
    %v330 = vpop.permute.xlu0 %329
    %331 = vrot.lane.b32.xlu0 %v326, 126
    %v332 = vpop.permute.xlu0 %331
    %333 = vrot.lane.b32.xlu0 %v328, 126
    %v334 = vpop.permute.xlu0 %333
    %v338 = vadd.f32 %v309, %v330
    %v339 = vadd.f32 %v310, %v332
    %v340 = vadd.f32 %v311, %v334
    %s341 = sld [smem:[#allocation2 + $0xd]]
    %v342 = vstv %s341
    %v343 = vmul.f32 %v27, %v342
    %v344 = vmul.f32 %v28, %v342
    %v345 = vmul.f32 %v29, %v342
    %v346 = vmul.f32 %v30, %v342
    %v351 = vrot.slane %v343, 2
    %v352 = vrot.slane %v344, 2
    %v353 = vsel %vm269, %v351, %v352
    %v354 = vrot.slane %v345, 2
    %v355 = vsel %vm269, %v352, %v354
    %v356 = vrot.slane %v346, 2
    %v357 = vsel %vm269, %v354, %v356
    %358 = vrot.lane.b32.xlu0 %v353, 125
    %v359 = vpop.permute.xlu0 %358
    %360 = vrot.lane.b32.xlu0 %v355, 125
    %v361 = vpop.permute.xlu0 %360
    %362 = vrot.lane.b32.xlu0 %v357, 125
    %v363 = vpop.permute.xlu0 %362
    %v367 = vadd.f32 %v338, %v359
    %v368 = vadd.f32 %v339, %v361
    %v369 = vadd.f32 %v340, %v363
    %s370 = sld [smem:[#allocation2 + $0xe]]
    %v371 = vstv %s370
    %v372 = vmul.f32 %v27, %v371
    %v373 = vmul.f32 %v28, %v371
    %v374 = vmul.f32 %v29, %v371
    %v375 = vmul.f32 %v30, %v371
    %v380 = vrot.slane %v372, 2
    %v381 = vrot.slane %v373, 2
    %v382 = vsel %vm269, %v380, %v381
    %v383 = vrot.slane %v374, 2
    %v384 = vsel %vm269, %v381, %v383
    %v385 = vrot.slane %v375, 2
    %v386 = vsel %vm269, %v383, %v385
    %387 = vrot.lane.b32.xlu0 %v382, 124
    %v388 = vpop.permute.xlu0 %387
    %389 = vrot.lane.b32.xlu0 %v384, 124
    %v390 = vpop.permute.xlu0 %389
    %391 = vrot.lane.b32.xlu0 %v386, 124
    %v392 = vpop.permute.xlu0 %391
    %v396 = vadd.f32 %v367, %v388
    %v397 = vadd.f32 %v368, %v390
    %v398 = vadd.f32 %v369, %v392
    %s399 = sld [smem:[#allocation2 + $0xf]]
    %v400 = vstv %s399
    %v401 = vmul.f32 %v27, %v400
    %v402 = vmul.f32 %v28, %v400
    %v403 = vmul.f32 %v29, %v400
    %v404 = vmul.f32 %v30, %v400
    %vm409 = vcmask 1044480
    %v410 = vrot.slane %v401, 3
    %v411 = vrot.slane %v402, 3
    %v412 = vsel %vm409, %v410, %v411
    %v413 = vrot.slane %v403, 3
    %v414 = vsel %vm409, %v411, %v413
    %v415 = vrot.slane %v404, 3
    %v416 = vsel %vm409, %v413, %v415
    %v420 = vadd.f32 %v396, %v412
    %v421 = vadd.f32 %v397, %v414
    %v422 = vadd.f32 %v398, %v416
    %s423 = sld [smem:[#allocation2 + $0x10]]
    %v424 = vstv %s423
    %v425 = vmul.f32 %v27, %v424
    %v426 = vmul.f32 %v28, %v424
    %v427 = vmul.f32 %v29, %v424
    %v428 = vmul.f32 %v30, %v424
    %v433 = vrot.slane %v425, 3
    %v434 = vrot.slane %v426, 3
    %v435 = vsel %vm409, %v433, %v434
    %v436 = vrot.slane %v427, 3
    %v437 = vsel %vm409, %v434, %v436
    %v438 = vrot.slane %v428, 3
    %v439 = vsel %vm409, %v436, %v438
    %440 = vrot.lane.b32.xlu0 %v435, 127
    %v441 = vpop.permute.xlu0 %440
    %442 = vrot.lane.b32.xlu0 %v437, 127
    %v443 = vpop.permute.xlu0 %442
    %444 = vrot.lane.b32.xlu0 %v439, 127
    %v445 = vpop.permute.xlu0 %444
    %v449 = vadd.f32 %v420, %v441
    %v450 = vadd.f32 %v421, %v443
    %v451 = vadd.f32 %v422, %v445
    %s452 = sld [smem:[#allocation2 + $0x11]]
    %v453 = vstv %s452
    %v454 = vmul.f32 %v27, %v453
    %v455 = vmul.f32 %v28, %v453
    %v456 = vmul.f32 %v29, %v453
    %v457 = vmul.f32 %v30, %v453
    %v462 = vrot.slane %v454, 3
    %v463 = vrot.slane %v455, 3
    %v464 = vsel %vm409, %v462, %v463
    %v465 = vrot.slane %v456, 3
    %v466 = vsel %vm409, %v463, %v465
    %v467 = vrot.slane %v457, 3
    %v468 = vsel %vm409, %v465, %v467
    %469 = vrot.lane.b32.xlu0 %v464, 126
    %v470 = vpop.permute.xlu0 %469
    %471 = vrot.lane.b32.xlu0 %v466, 126
    %v472 = vpop.permute.xlu0 %471
    %473 = vrot.lane.b32.xlu0 %v468, 126
    %v474 = vpop.permute.xlu0 %473
    %v478 = vadd.f32 %v449, %v470
    %v479 = vadd.f32 %v450, %v472
    %v480 = vadd.f32 %v451, %v474
    %s481 = sld [smem:[#allocation2 + $0x12]]
    %v482 = vstv %s481
    %v483 = vmul.f32 %v27, %v482
    %v484 = vmul.f32 %v28, %v482
    %v485 = vmul.f32 %v29, %v482
    %v486 = vmul.f32 %v30, %v482
    %v491 = vrot.slane %v483, 3
    %v492 = vrot.slane %v484, 3
    %v493 = vsel %vm409, %v491, %v492
    %v494 = vrot.slane %v485, 3
    %v495 = vsel %vm409, %v492, %v494
    %v496 = vrot.slane %v486, 3
    %v497 = vsel %vm409, %v494, %v496
    %498 = vrot.lane.b32.xlu0 %v493, 125
    %v499 = vpop.permute.xlu0 %498
    %500 = vrot.lane.b32.xlu0 %v495, 125
    %v501 = vpop.permute.xlu0 %500
    %502 = vrot.lane.b32.xlu0 %v497, 125
    %v503 = vpop.permute.xlu0 %502
    %v507 = vadd.f32 %v478, %v499
    %v508 = vadd.f32 %v479, %v501
    %v509 = vadd.f32 %v480, %v503
    %s510 = sld [smem:[#allocation2 + $0x13]]
    %v511 = vstv %s510
    %v512 = vmul.f32 %v27, %v511
    %v513 = vmul.f32 %v28, %v511
    %v514 = vmul.f32 %v29, %v511
    %v515 = vmul.f32 %v30, %v511
    %v520 = vrot.slane %v512, 3
    %v521 = vrot.slane %v513, 3
    %v522 = vsel %vm409, %v520, %v521
    %v523 = vrot.slane %v514, 3
    %v524 = vsel %vm409, %v521, %v523
    %v525 = vrot.slane %v515, 3
    %v526 = vsel %vm409, %v523, %v525
    %527 = vrot.lane.b32.xlu0 %v522, 124
    %v528 = vpop.permute.xlu0 %527
    %529 = vrot.lane.b32.xlu0 %v524, 124
    %v530 = vpop.permute.xlu0 %529
    %531 = vrot.lane.b32.xlu0 %v526, 124
    %v532 = vpop.permute.xlu0 %531
    %v536 = vadd.f32 %v507, %v528
    %v537 = vadd.f32 %v508, %v530
    %v538 = vadd.f32 %v509, %v532
    %s539 = sld [smem:[#allocation2 + $0x14]]
    %v540 = vstv %s539
    %v541 = vmul.f32 %v27, %v540
    %v542 = vmul.f32 %v28, %v540
    %v543 = vmul.f32 %v29, %v540
    %v544 = vmul.f32 %v30, %v540
    %vm549 = vcmask 1043456
    %v550 = vrot.slane %v541, 4
    %v551 = vrot.slane %v542, 4
    %v552 = vsel %vm549, %v550, %v551
    %v553 = vrot.slane %v543, 4
    %v554 = vsel %vm549, %v551, %v553
    %v555 = vrot.slane %v544, 4
    %v556 = vsel %vm549, %v553, %v555
    %v560 = vadd.f32 %v536, %v552
    %v561 = vadd.f32 %v537, %v554
    %v562 = vadd.f32 %v538, %v556
    %s563 = sld [smem:[#allocation2 + $0x15]]
    %v564 = vstv %s563
    %v565 = vmul.f32 %v27, %v564
    %v566 = vmul.f32 %v28, %v564
    %v567 = vmul.f32 %v29, %v564
    %v568 = vmul.f32 %v30, %v564
    %v573 = vrot.slane %v565, 4
    %v574 = vrot.slane %v566, 4
    %v575 = vsel %vm549, %v573, %v574
    %v576 = vrot.slane %v567, 4
    %v577 = vsel %vm549, %v574, %v576
    %v578 = vrot.slane %v568, 4
    %v579 = vsel %vm549, %v576, %v578
    %580 = vrot.lane.b32.xlu0 %v575, 127
    %v581 = vpop.permute.xlu0 %580
    %582 = vrot.lane.b32.xlu0 %v577, 127
    %v583 = vpop.permute.xlu0 %582
    %584 = vrot.lane.b32.xlu0 %v579, 127
    %v585 = vpop.permute.xlu0 %584
    %v589 = vadd.f32 %v560, %v581
    %v590 = vadd.f32 %v561, %v583
    %v591 = vadd.f32 %v562, %v585
    %s592 = sld [smem:[#allocation2 + $0x16]]
    %v593 = vstv %s592
    %v594 = vmul.f32 %v27, %v593
    %v595 = vmul.f32 %v28, %v593
    %v596 = vmul.f32 %v29, %v593
    %v597 = vmul.f32 %v30, %v593
    %v602 = vrot.slane %v594, 4
    %v603 = vrot.slane %v595, 4
    %v604 = vsel %vm549, %v602, %v603
    %v605 = vrot.slane %v596, 4
    %v606 = vsel %vm549, %v603, %v605
    %v607 = vrot.slane %v597, 4
    %v608 = vsel %vm549, %v605, %v607
    %609 = vrot.lane.b32.xlu0 %v604, 126
    %v610 = vpop.permute.xlu0 %609
    %611 = vrot.lane.b32.xlu0 %v606, 126
    %v612 = vpop.permute.xlu0 %611
    %613 = vrot.lane.b32.xlu0 %v608, 126
    %v614 = vpop.permute.xlu0 %613
    %v618 = vadd.f32 %v589, %v610
    %v619 = vadd.f32 %v590, %v612
    %v620 = vadd.f32 %v591, %v614
    %s621 = sld [smem:[#allocation2 + $0x17]]
    %v622 = vstv %s621
    %v623 = vmul.f32 %v27, %v622
    %v624 = vmul.f32 %v28, %v622
    %v625 = vmul.f32 %v29, %v622
    %v626 = vmul.f32 %v30, %v622
    %v631 = vrot.slane %v623, 4
    %v632 = vrot.slane %v624, 4
    %v633 = vsel %vm549, %v631, %v632
    %v634 = vrot.slane %v625, 4
    %v635 = vsel %vm549, %v632, %v634
    %v636 = vrot.slane %v626, 4
    %v637 = vsel %vm549, %v634, %v636
    %638 = vrot.lane.b32.xlu0 %v633, 125
    %v639 = vpop.permute.xlu0 %638
    %640 = vrot.lane.b32.xlu0 %v635, 125
    %v641 = vpop.permute.xlu0 %640
    %642 = vrot.lane.b32.xlu0 %v637, 125
    %v643 = vpop.permute.xlu0 %642
    %v647 = vadd.f32 %v618, %v639
    %v648 = vadd.f32 %v619, %v641
    %v649 = vadd.f32 %v620, %v643
    %s650 = sld [smem:[#allocation2 + $0x18]]
    %v651 = vstv %s650
    %v652 = vmul.f32 %v27, %v651
    %v653 = vmul.f32 %v28, %v651
    %v654 = vmul.f32 %v29, %v651
    %v655 = vmul.f32 %v30, %v651
    %v660 = vrot.slane %v652, 4
    %v661 = vrot.slane %v653, 4
    %v662 = vsel %vm549, %v660, %v661
    %v663 = vrot.slane %v654, 4
    %v664 = vsel %vm549, %v661, %v663
    %v665 = vrot.slane %v655, 4
    %v666 = vsel %vm549, %v663, %v665
    %667 = vrot.lane.b32.xlu0 %v662, 124
    %v668 = vpop.permute.xlu0 %667
    %669 = vrot.lane.b32.xlu0 %v664, 124
    %v670 = vpop.permute.xlu0 %669
    %671 = vrot.lane.b32.xlu0 %v666, 124
    %v672 = vpop.permute.xlu0 %671
    %v676 = vadd.f32 %v647, %v668
    %v677 = vadd.f32 %v648, %v670
    %v678 = vadd.f32 %v649, %v672
    %s679 = sld [smem:[#allocation2 + $0x19]]
    %v680 = vstv %s679
    %v681 = vadd.f32 %v676, %v680
    %v682 = vadd.f32 %v677, %v680
    %v683 = vadd.f32 %v678, %v680
    %v684 = vmax.f32 %v681, 0.0
    %v685 = vmax.f32 %v682, 0.0
    %v686 = vmax.f32 %v683, 0.0
    %v690 = vrot.slane %v684, 1
    %v691 = vrot.slane %v685, 1
    %v692 = vsel %vm129, %v690, %v691
    %v693 = vrot.slane %v686, 1
    %v694 = vsel %vm129, %v691, %v693
    %v698 = vmax.f32 %v684, %v692
    %v699 = vmax.f32 %v685, %v694
    %v700 = vmax.f32 %v686, %v693
    %704 = vrot.lane.b32.xlu0 %v698, 127
    %v705 = vpop.permute.xlu0 %704
    %706 = vrot.lane.b32.xlu0 %v699, 127
    %v707 = vpop.permute.xlu0 %706
    %708 = vrot.lane.b32.xlu0 %v700, 127
    %v709 = vpop.permute.xlu0 %708
    %v713 = vmax.f32 %v698, %v705
    %v714 = vmax.f32 %v699, %v707
    %v715 = vmax.f32 %v700, %v709
    %s716 = sld [smem:[#allocation2 + $0x1a]]
    %v717 = vstv %s716
    %v718 = vmul.f32 %v713, %v717
    %v719 = vmul.f32 %v714, %v717
    %v720 = vmul.f32 %v715, %v717
    %v721 = vadd.f32 %v718, 0.0
    %v722 = vadd.f32 %v719, 0.0
    %v723 = vadd.f32 %v720, 0.0
    %s724 = sld [smem:[#allocation2 + $0x1b]]
    %v725 = vstv %s724
    %v726 = vmul.f32 %v713, %v725
    %v727 = vmul.f32 %v714, %v725
    %v728 = vmul.f32 %v715, %v725
    %732 = vrot.lane.b32.xlu0 %v726, 126
    %v733 = vpop.permute.xlu0 %732
    %734 = vrot.lane.b32.xlu0 %v727, 126
    %v735 = vpop.permute.xlu0 %734
    %736 = vrot.lane.b32.xlu0 %v728, 126
    %v737 = vpop.permute.xlu0 %736
    %v741 = vadd.f32 %v721, %v733
    %v742 = vadd.f32 %v722, %v735
    %v743 = vadd.f32 %v723, %v737
    %s744 = sld [smem:[#allocation2 + $0x1c]]
    %v745 = vstv %s744
    %v746 = vmul.f32 %v713, %v745
    %v747 = vmul.f32 %v714, %v745
    %v748 = vmul.f32 %v715, %v745
    %752 = vrot.lane.b32.xlu0 %v746, 124
    %v753 = vpop.permute.xlu0 %752
    %754 = vrot.lane.b32.xlu0 %v747, 124
    %v755 = vpop.permute.xlu0 %754
    %756 = vrot.lane.b32.xlu0 %v748, 124
    %v757 = vpop.permute.xlu0 %756
    %v761 = vadd.f32 %v741, %v753
    %v762 = vadd.f32 %v742, %v755
    %v763 = vadd.f32 %v743, %v757
    %s764 = sld [smem:[#allocation2 + $0x1d]]
    %v765 = vstv %s764
    %v766 = vmul.f32 %v713, %v765
    %v767 = vmul.f32 %v714, %v765
    %v768 = vmul.f32 %v715, %v765
    %v772 = vrot.slane %v766, 2
    %v773 = vrot.slane %v767, 2
    %v774 = vsel %vm269, %v772, %v773
    %v775 = vrot.slane %v768, 2
    %v776 = vsel %vm269, %v773, %v775
    %v780 = vadd.f32 %v761, %v774
    %v781 = vadd.f32 %v762, %v776
    %v782 = vadd.f32 %v763, %v775
    %s783 = sld [smem:[#allocation2 + $0x1e]]
    %v784 = vstv %s783
    %v785 = vmul.f32 %v713, %v784
    %v786 = vmul.f32 %v714, %v784
    %v787 = vmul.f32 %v715, %v784
    %v791 = vrot.slane %v785, 2
    %v792 = vrot.slane %v786, 2
    %v793 = vsel %vm269, %v791, %v792
    %v794 = vrot.slane %v787, 2
    %v795 = vsel %vm269, %v792, %v794
    %796 = vrot.lane.b32.xlu0 %v793, 126
    %v797 = vpop.permute.xlu0 %796
    %798 = vrot.lane.b32.xlu0 %v795, 126
    %v799 = vpop.permute.xlu0 %798
    %800 = vrot.lane.b32.xlu0 %v794, 126
    %v801 = vpop.permute.xlu0 %800
    %v805 = vadd.f32 %v780, %v797
    %v806 = vadd.f32 %v781, %v799
    %v807 = vadd.f32 %v782, %v801
    %s808 = sld [smem:[#allocation2 + $0x1f]]
    %v809 = vstv %s808
    %v810 = vmul.f32 %v713, %v809
    %v811 = vmul.f32 %v714, %v809
    %v812 = vmul.f32 %v715, %v809
    %v816 = vrot.slane %v810, 2
    %v817 = vrot.slane %v811, 2
    %v818 = vsel %vm269, %v816, %v817
    %v819 = vrot.slane %v812, 2
    %v820 = vsel %vm269, %v817, %v819
    %821 = vrot.lane.b32.xlu0 %v818, 124
    %v822 = vpop.permute.xlu0 %821
    %823 = vrot.lane.b32.xlu0 %v820, 124
    %v824 = vpop.permute.xlu0 %823
    %825 = vrot.lane.b32.xlu0 %v819, 124
    %v826 = vpop.permute.xlu0 %825
    %v830 = vadd.f32 %v805, %v822
    %v831 = vadd.f32 %v806, %v824
    %v832 = vadd.f32 %v807, %v826
    %s833 = sld [smem:[#allocation2 + $0x20]]
    %v834 = vstv %s833
    %v835 = vmul.f32 %v713, %v834
    %v836 = vmul.f32 %v714, %v834
    %v837 = vmul.f32 %v715, %v834
    %v841 = vrot.slane %v835, 4
    %v842 = vrot.slane %v836, 4
    %v843 = vsel %vm549, %v841, %v842
    %v844 = vrot.slane %v837, 4
    %v845 = vsel %vm549, %v842, %v844
    %v849 = vadd.f32 %v830, %v843
    %v850 = vadd.f32 %v831, %v845
    %v851 = vadd.f32 %v832, %v844
    %s852 = sld [smem:[#allocation2 + $0x21]]
    %v853 = vstv %s852
    %v854 = vmul.f32 %v713, %v853
    %v855 = vmul.f32 %v714, %v853
    %v856 = vmul.f32 %v715, %v853
    %v860 = vrot.slane %v854, 4
    %v861 = vrot.slane %v855, 4
    %v862 = vsel %vm549, %v860, %v861
    %v863 = vrot.slane %v856, 4
    %v864 = vsel %vm549, %v861, %v863
    %865 = vrot.lane.b32.xlu0 %v862, 126
    %v866 = vpop.permute.xlu0 %865
    %867 = vrot.lane.b32.xlu0 %v864, 126
    %v868 = vpop.permute.xlu0 %867
    %869 = vrot.lane.b32.xlu0 %v863, 126
    %v870 = vpop.permute.xlu0 %869
    %v874 = vadd.f32 %v849, %v866
    %v875 = vadd.f32 %v850, %v868
    %v876 = vadd.f32 %v851, %v870
    %s877 = sld [smem:[#allocation2 + $0x22]]
    %v878 = vstv %s877
    %v879 = vmul.f32 %v713, %v878
    %v880 = vmul.f32 %v714, %v878
    %v881 = vmul.f32 %v715, %v878
    %v885 = vrot.slane %v879, 4
    %v886 = vrot.slane %v880, 4
    %v887 = vsel %vm549, %v885, %v886
    %v888 = vrot.slane %v881, 4
    %v889 = vsel %vm549, %v886, %v888
    %890 = vrot.lane.b32.xlu0 %v887, 124
    %v891 = vpop.permute.xlu0 %890
    %892 = vrot.lane.b32.xlu0 %v889, 124
    %v893 = vpop.permute.xlu0 %892
    %894 = vrot.lane.b32.xlu0 %v888, 124
    %v895 = vpop.permute.xlu0 %894
    %v899 = vadd.f32 %v874, %v891
    %v900 = vadd.f32 %v875, %v893
    %v901 = vadd.f32 %v876, %v895
    %s902 = sld [smem:[#allocation2 + $0x23]]
    %v903 = vstv %s902
    %v904 = vadd.f32 %v899, %v903
    %v905 = vadd.f32 %v900, %v903
    %v906 = vadd.f32 %v901, %v903
    %v907 = vmax.f32 %v904, 0.0
    %v908 = vmax.f32 %v905, 0.0
    %v909 = vmax.f32 %v906, 0.0
    %v913 = vrot.slane %v907, 2
    %v914 = vrot.slane %v908, 2
    %v915 = vsel %vm269, %v913, %v914
    %v916 = vrot.slane %v909, 2
    %v917 = vsel %vm269, %v914, %v916
    %v921 = vmax.f32 %v907, %v915
    %v922 = vmax.f32 %v908, %v917
    %v923 = vmax.f32 %v909, %v916
    %927 = vrot.lane.b32.xlu0 %v921, 126
    %v928 = vpop.permute.xlu0 %927
    %929 = vrot.lane.b32.xlu0 %v922, 126
    %v930 = vpop.permute.xlu0 %929
    %931 = vrot.lane.b32.xlu0 %v923, 126
    %v932 = vpop.permute.xlu0 %931
    %v936 = vmax.f32 %v921, %v928
    %v937 = vmax.f32 %v922, %v930
    %v938 = vmax.f32 %v923, %v932
    %v939 = vlaneseq
    %v940 = vand.u32 %v939, 127
    %v941 = vld [vmem:[%s2] sm:$0xff]
    %v942 = vld [vmem:[%s2 + $0x8] sm:$0xff]
    %v943 = vld [vmem:[%s2 + $0x10] sm:$0x1]
    %v944 = vmul.f32 %v936, %v941
    %v945 = vmul.f32 %v937, %v942
    %v946 = vmul.f32 %v938, %v943
    %vm947 = vcmask 138240
    %v948 = vsel %vm947, %v944, 0.0
    %v949 = vsel %vm947, %v945, 0.0
    %v950 = vadd.f32 %v948, %v949
    %vm951 = vcmask 131072
    %v952 = vsel %vm951, %v946, 0.0
    %v953 = vadd.f32 %v950, %v952
    %954 = vadd.xlane.f32.xlu0 %v953
    %v955 = vpop.xlane.xlu0 %954
    %v956 = vrot.slane %v955, 4
    %v957 = vadd.f32 %v955, %v956
    %v958 = vrot.slane %v957, 2
    %v959 = vadd.f32 %v957, %v958
    %v960 = vrot.slane %v959, 1
    %v961 = vadd.f32 %v959, %v960
    %s962 = vtos %v961
    %s963 = sld [smem:[#allocation2 + $0x24]]
    %s964 = sadd.f32 %s962, %s963
    %vm965 = vcmp.eq.s32.totalorder %v940, 0
    %v966 = vsel %vm965, 1, 0
    %v967 = vcvt.s32.f32 %v966
    %v968 = vstv %s964
    %v969 = vmul.f32 %v968, %v967
    %v970 = vadd.f32 %v969, 0.0
    %s971 = scalar_lea.vmem %s2, 24
    %v972 = vld [vmem:[%s971] sm:$0xff]
    %v973 = vld [vmem:[%s971 + $0x8] sm:$0xff]
    %v974 = vld [vmem:[%s971 + $0x10] sm:$0x1]
    %v975 = vmul.f32 %v936, %v972
    %v976 = vmul.f32 %v937, %v973
    %v977 = vmul.f32 %v938, %v974
    %v978 = vsel %vm947, %v975, 0.0
    %v979 = vsel %vm947, %v976, 0.0
    %v980 = vadd.f32 %v978, %v979
    %v981 = vsel %vm951, %v977, 0.0
    %v982 = vadd.f32 %v980, %v981
    %983 = vadd.xlane.f32.xlu0 %v982
    %v984 = vpop.xlane.xlu0 %983
    %v985 = vrot.slane %v984, 4
    %v986 = vadd.f32 %v984, %v985
    %v987 = vrot.slane %v986, 2
    %v988 = vadd.f32 %v986, %v987
    %v989 = vrot.slane %v988, 1
    %v990 = vadd.f32 %v988, %v989
    %s991 = vtos %v990
    %s992 = sld [smem:[#allocation2 + $0x25]]
    %s993 = sadd.f32 %s991, %s992
    %vm994 = vcmp.eq.s32.totalorder %v940, 1
    %v995 = vsel %vm994, 1, 0
    %v996 = vcvt.s32.f32 %v995
    %v997 = vstv %s993
    %v998 = vmul.f32 %v997, %v996
    %v999 = vadd.f32 %v970, %v998
    %s1000 = scalar_lea.vmem %s2, 48
    %v1001 = vld [vmem:[%s1000] sm:$0xff]
    %v1002 = vld [vmem:[%s1000 + $0x8] sm:$0xff]
    %v1003 = vld [vmem:[%s1000 + $0x10] sm:$0x1]
    %v1004 = vmul.f32 %v936, %v1001
    %v1005 = vmul.f32 %v937, %v1002
    %v1006 = vmul.f32 %v938, %v1003
    %v1007 = vsel %vm947, %v1004, 0.0
    %v1008 = vsel %vm947, %v1005, 0.0
    %v1009 = vadd.f32 %v1007, %v1008
    %v1010 = vsel %vm951, %v1006, 0.0
    %v1011 = vadd.f32 %v1009, %v1010
    %1012 = vadd.xlane.f32.xlu0 %v1011
    %v1013 = vpop.xlane.xlu0 %1012
    %v1014 = vrot.slane %v1013, 4
    %v1015 = vadd.f32 %v1013, %v1014
    %v1016 = vrot.slane %v1015, 2
    %v1017 = vadd.f32 %v1015, %v1016
    %v1018 = vrot.slane %v1017, 1
    %v1019 = vadd.f32 %v1017, %v1018
    %s1020 = vtos %v1019
    %s1021 = sld [smem:[#allocation2 + $0x26]]
    %s1022 = sadd.f32 %s1020, %s1021
    %vm1023 = vcmp.eq.s32.totalorder %v940, 2
    %v1024 = vsel %vm1023, 1, 0
    %v1025 = vcvt.s32.f32 %v1024
    %v1026 = vstv %s1022
    %v1027 = vmul.f32 %v1026, %v1025
    %v1028 = vadd.f32 %v999, %v1027
    %s1029 = scalar_lea.vmem %s2, 72
    %v1030 = vld [vmem:[%s1029] sm:$0xff]
    %v1031 = vld [vmem:[%s1029 + $0x8] sm:$0xff]
    %v1032 = vld [vmem:[%s1029 + $0x10] sm:$0x1]
    %v1033 = vmul.f32 %v936, %v1030
    %v1034 = vmul.f32 %v937, %v1031
    %v1035 = vmul.f32 %v938, %v1032
    %v1036 = vsel %vm947, %v1033, 0.0
    %v1037 = vsel %vm947, %v1034, 0.0
    %v1038 = vadd.f32 %v1036, %v1037
    %v1039 = vsel %vm951, %v1035, 0.0
    %v1040 = vadd.f32 %v1038, %v1039
    %1041 = vadd.xlane.f32.xlu0 %v1040
    %v1042 = vpop.xlane.xlu0 %1041
    %v1043 = vrot.slane %v1042, 4
    %v1044 = vadd.f32 %v1042, %v1043
    %v1045 = vrot.slane %v1044, 2
    %v1046 = vadd.f32 %v1044, %v1045
    %v1047 = vrot.slane %v1046, 1
    %v1048 = vadd.f32 %v1046, %v1047
    %s1049 = vtos %v1048
    %s1050 = sld [smem:[#allocation2 + $0x27]]
    %s1051 = sadd.f32 %s1049, %s1050
    %vm1052 = vcmp.eq.s32.totalorder %v940, 3
    %v1053 = vsel %vm1052, 1, 0
    %v1054 = vcvt.s32.f32 %v1053
    %v1055 = vstv %s1051
    %v1056 = vmul.f32 %v1055, %v1054
    %v1057 = vadd.f32 %v1028, %v1056
    %v1058 = vmax.f32 %v1057, 0.0
    %1059 = vmax.xlane.f32.xlu0 %v1058
    %v1060 = vpop.xlane.xlu0 %1059
    %s1061 = vtos %v1060
    %vm1062 = vcmp.lt.s32.totalorder %v940, 4
    %v1063 = vstv %s1061
    %v1064 = vsub.f32 %v1058, %v1063
    %v1065 = vmul.f32 %v1064, 1.442695
    %v1066 = vpow.pop %v1065
    %v1067 = vsel %vm1062, %v1066, 0.0
    %vm1068 = vcmask 1040384
    %v1069 = vsel %vm1068, %v1067, 0.0
    %1070 = vadd.xlane.f32.xlu0 %v1069
    %v1071 = vpop.xlane.xlu0 %1070
    %v1072 = vrot.slane %v1071, 4
    %v1073 = vadd.f32 %v1071, %v1072
    %v1074 = vrot.slane %v1073, 2
    %v1075 = vadd.f32 %v1073, %v1074
    %v1076 = vrot.slane %v1075, 1
    %v1077 = vadd.f32 %v1075, %v1076
    %s1078 = vtos %v1077
    %v1079 = vstv %s1078
    %v1080 = vrcp.pop %v1079
    %v1081 = vmul.f32 %v1067, %v1080
    %1082 = vst [vmem:[%s3] sm:$0x1] %v1081
    // Predicated region
    $region18: #{net_forward.1} parent=1 // pred_check
      _
    $region19: #{net_forward.1} parent=1 // pred_check_branch
      %1084 = sbr.rel (0) target = $region21
    $region20: #{net_forward.1} parent=1 // pred_region
      _
    $region21: #{net_forward.1} parent=1 // pred_fallthru
      _
    // Predicated region
    $region22: #{net_forward.1} parent=1 // pred_check
      _
    $region23: #{net_forward.1} parent=1 // pred_check_branch
      %1086 = sbr.rel (0) target = $region25
    $region24: #{net_forward.1} parent=1 // pred_region
      _
    $region25: #{net_forward.1} parent=1 // pred_fallthru
      _
    %1087 = vsyncpa [#allocation3], 1

</llo_original>
